<compile_context>
chip_gen: v7x
topology: tpu7x:2x2x1
jax: 0.10.0
libtpu: 0.0.40
codegen_flags: <defaults>
</compile_context>

<pallas_src>
import numpy as np
import jax
import jax.numpy as jnp
from jax.experimental import pallas as pl
from jax.experimental.pallas import tpu as pltpu

NUM_HEADS = 8
_NEG_BIG = -1e30
_VMEM_LIMIT = 48 * 1024 * 1024   # v7x-safe (64 MiB physical) with headroom


def _kv_proj_kernel(cnt_ref, x_ref, wk_ref, bk_ref, wv_ref, bv_ref, kT_ref, v_ref):
    """Per key-row block: kT = (x@Wk + bk)^T, v = x@Wv + bv  (bf16 out, f32 accumulation).
    Blocks with zero coastal nodes are skipped entirely — pass B never reads their K/V
    (it skips the same blocks), so the stale data written back is never consumed."""
    i = pl.program_id(0)

    @pl.when(cnt_ref[i] > 0)
    def _compute():
        x = x_ref[...].astype(jnp.bfloat16)
        k = jnp.dot(x, wk_ref[...], preferred_element_type=jnp.float32) + bk_ref[...]
        kT_ref[...] = k.T.astype(jnp.bfloat16)
        v = jnp.dot(x, wv_ref[...], preferred_element_type=jnp.float32) + bv_ref[...]
        v_ref[...] = v.astype(jnp.bfloat16)


def _flash_attn_kernel(cnt_ref, x_ref, wq_ref, bq_ref, kT_ref, v_ref, mq_ref, mk_ref,
                       wo_ref, bo_ref, out_ref, q_sc, m_sc, l_sc, acc_sc):
    """Flash-style key-masked multi-head self-attention.

    grid = (num_q_blocks [parallel], num_k_blocks [arbitrary]).
    ki==0: Q projection (fused here; 1/sqrt(d) folded in) + accumulator init.
    count>0: online-softmax update over this key block; non-coastal keys get a -1e30
             additive bias -> exactly-zero weight (p underflows to 0 because any count>0
             block contributes a real, finite running max).
    ki==last: normalize, single output projection, clone-and-overwrite via select."""
    ki = pl.program_id(1)
    hdim = x_ref.shape[1]
    d = hdim // NUM_HEADS
    scale = 1.0 / float(np.sqrt(d))

    @pl.when(ki == 0)
    def _init():
        xb = x_ref[...].astype(jnp.bfloat16)
        q = jnp.dot(xb, wq_ref[...], preferred_element_type=jnp.float32) + bq_ref[...]
        q_sc[...] = (q * scale).astype(jnp.bfloat16)
        m_sc[...] = jnp.full_like(m_sc, -jnp.inf)
        l_sc[...] = jnp.zeros_like(l_sc)
        acc_sc[...] = jnp.zeros_like(acc_sc)

    @pl.when(cnt_ref[ki] > 0)
    def _process():
        key_bias = (1.0 - mk_ref[...]) * _NEG_BIG           # [1, TK] f32
        # Static per-head loop with immediate scratch stores: each head's [TQ,TK] score /
        # p tiles die before the next head starts, keeping vreg pressure at one head.
        for h in range(NUM_HEADS):
            sl = slice(h * d, (h + 1) * d)
            # [TQ, d] @ [d, TK] -> f32 scores on the MXU (ref slices, no full-tile loads).
            s = jnp.dot(q_sc[:, sl], kT_ref[sl, :], preferred_element_type=jnp.float32)
            s = s + key_bias
            m_prev = m_sc[:, h:h + 1]                                        # [TQ, 1]
            m_new = jnp.maximum(m_prev, jnp.max(s, axis=-1, keepdims=True))  # [TQ, 1]
            alpha = jnp.exp(m_prev - m_new)                                  # [TQ, 1]
            p = jnp.exp(s - m_new)                                           # [TQ, TK]
            l_sc[:, h:h + 1] = alpha * l_sc[:, h:h + 1] + jnp.sum(p, axis=-1, keepdims=True)
            acc_sc[:, sl] = alpha * acc_sc[:, sl] + jnp.dot(
                p.astype(jnp.bfloat16), v_ref[:, sl], preferred_element_type=jnp.float32)
            m_sc[:, h:h + 1] = m_new

    @pl.when(ki == pl.num_programs(1) - 1)
    def _finalize():
        # Exact reciprocal: finalize runs once per query block, so the EUP-approx saving
        # is negligible and exact division keeps tighter parity with the f32 reference.
        for h in range(NUM_HEADS):
            sl = slice(h * d, (h + 1) * d)
            inv_l = pl.reciprocal(l_sc[:, h:h + 1], approx=False)            # [TQ, 1]
            acc_sc[:, sl] = acc_sc[:, sl] * inv_l
        # Single [TQ,H]@[H,H] output projection (no concatenate, no per-head projections).
        attended = jnp.dot(acc_sc[...].astype(jnp.bfloat16), wo_ref[...],
                           preferred_element_type=jnp.float32) + bo_ref[...]
        # node_features.clone(); node_features[coastal_mask] = attended
        coastal = jnp.broadcast_to(mq_ref[...] > 0.5, attended.shape)
        out_ref[...] = jnp.where(coastal, attended, x_ref[...]).astype(out_ref.dtype)


def coastal_boundary_attention(node_features, coastal_mask, params,
                               *, block_q=256, block_k=256):
    """node_features: [N, H] float32, coastal_mask: [N] bool.
    params = (W1,b1,W2,b2, Wq,bq, Wk,bk, Wv,bv, Wo,bo); W1..b2 (coastal_encoder) are
    accepted for parity with the PyTorch module but are dead code w.r.t. its output.
    NOTE: node_features is donated to the second pass (input_output_aliases)."""
    n, hdim = node_features.shape
    assert hdim % NUM_HEADS == 0, "hidden_dim must be divisible by num_heads=8"
    block_q = min(block_q, n)
    block_k = min(block_k, n)
    # Keep >= 2 query blocks where possible so v7x's 2 TensorCores both get work.
    if n // block_q < 2 and n % 2 == 0 and (n // 2) % 8 == 0:
        block_q = n // 2
    assert n % block_q == 0 and n % block_k == 0, "N must be a multiple of the block sizes"
    assert block_q % 8 == 0
    assert block_k % 128 == 0 or block_k == n

    (_w1, _b1, _w2, _b2, wq, bq, wk, bk, wv, bv, wo, bo) = params

    f32 = jnp.float32
    bq = jnp.asarray(bq, f32).reshape(1, hdim)
    bk = jnp.asarray(bk, f32).reshape(1, hdim)
    bv = jnp.asarray(bv, f32).reshape(1, hdim)
    bo = jnp.asarray(bo, f32).reshape(1, hdim)
    # bf16 weights: native MXU dtype; halves resident-weight VMEM.
    wq_bf = jnp.asarray(wq).astype(jnp.bfloat16)
    wk_bf = jnp.asarray(wk).astype(jnp.bfloat16)
    wv_bf = jnp.asarray(wv).astype(jnp.bfloat16)
    wo_bf = jnp.asarray(wo).astype(jnp.bfloat16)

    mask_col = coastal_mask.astype(f32).reshape(n, 1)   # query-row coastal flag
    mask_row = coastal_mask.astype(f32).reshape(1, n)   # key-column coastal flag

    nq = n // block_q
    nk = n // block_k
    # Per-key-block coastal counts (scalar-prefetched into SMEM for block skipping).
    counts = jnp.sum(coastal_mask.reshape(nk, block_k).astype(jnp.int32), axis=1)

    cparams_a = pltpu.CompilerParams(dimension_semantics=("parallel",),
                                     vmem_limit_bytes=_VMEM_LIMIT)
    cparams_b = pltpu.CompilerParams(dimension_semantics=("parallel", "arbitrary"),
                                     vmem_limit_bytes=_VMEM_LIMIT)

    # ---- pass A: K^T / V projection (row blocks == key blocks; zero-coastal blocks skipped)
    kT, v = pl.pallas_call(
        _kv_proj_kernel,
        grid_spec=pltpu.PrefetchScalarGridSpec(
            num_scalar_prefetch=1,
            grid=(nk,),
            in_specs=[
                pl.BlockSpec((block_k, hdim), lambda i, cnt: (i, 0)),   # x rows
                pl.BlockSpec((hdim, hdim), lambda i, cnt: (0, 0)),      # Wk (resident)
                pl.BlockSpec((1, hdim), lambda i, cnt: (0, 0)),         # bk
                pl.BlockSpec((hdim, hdim), lambda i, cnt: (0, 0)),      # Wv (resident)
                pl.BlockSpec((1, hdim), lambda i, cnt: (0, 0)),         # bv
            ],
            out_specs=(
                pl.BlockSpec((hdim, block_k), lambda i, cnt: (0, i)),   # k^T [H, N]
                pl.BlockSpec((block_k, hdim), lambda i, cnt: (i, 0)),   # v   [N, H]
            ),
        ),
        out_shape=(
            jax.ShapeDtypeStruct((hdim, n), jnp.bfloat16),
            jax.ShapeDtypeStruct((n, hdim), jnp.bfloat16),
        ),
        compiler_params=cparams_a,
    )(counts, node_features, wk_bf, bk, wv_bf, bv)

    # ---- pass B: fused Q proj + flash-style masked MHA + clone-and-overwrite ----
    out = pl.pallas_call(
        _flash_attn_kernel,
        grid_spec=pltpu.PrefetchScalarGridSpec(
            num_scalar_prefetch=1,
            grid=(nq, nk),
            in_specs=[
                pl.BlockSpec((block_q, hdim), lambda qi, ki, cnt: (qi, 0)),   # x block
                pl.BlockSpec((hdim, hdim), lambda qi, ki, cnt: (0, 0)),       # Wq (resident)
                pl.BlockSpec((1, hdim), lambda qi, ki, cnt: (0, 0)),          # bq
                pl.BlockSpec((hdim, block_k), lambda qi, ki, cnt: (0, ki)),   # k^T block
                pl.BlockSpec((block_k, hdim), lambda qi, ki, cnt: (ki, 0)),   # v block
                pl.BlockSpec((block_q, 1), lambda qi, ki, cnt: (qi, 0)),      # coastal (queries)
                pl.BlockSpec((1, block_k), lambda qi, ki, cnt: (0, ki)),      # coastal (keys)
                pl.BlockSpec((hdim, hdim), lambda qi, ki, cnt: (0, 0)),       # Wo (resident)
                pl.BlockSpec((1, hdim), lambda qi, ki, cnt: (0, 0)),          # bo
            ],
            out_specs=pl.BlockSpec((block_q, hdim), lambda qi, ki, cnt: (qi, 0)),
            scratch_shapes=[
                pltpu.VMEM((block_q, hdim), jnp.bfloat16),       # q (scaled), fused at ki==0
                pltpu.VMEM((block_q, NUM_HEADS), jnp.float32),   # running max (per head)
                pltpu.VMEM((block_q, NUM_HEADS), jnp.float32),   # running sum (per head)
                pltpu.VMEM((block_q, hdim), jnp.float32),        # unnormalized context acc
            ],
        ),
        out_shape=jax.ShapeDtypeStruct((n, hdim), node_features.dtype),
        # Flat input index 1 == node_features (index 0 is the scalar-prefetch counts array).
        input_output_aliases={1: 0},
        compiler_params=cparams_b,
    )(counts, node_features, wq_bf, bq, kT, v, mask_col, mask_row, wo_bf, bo)
    return out


def _reference_forward(x, mask, params):
    """Numpy f32 reference mirroring the PyTorch forward (eval mode, dropout inactive)."""
    (_w1, _b1, _w2, _b2, wq, bq, wk, bk, wv, bv, wo, bo) = [
        np.asarray(p, np.float32) for p in params]
    x = np.asarray(x, np.float32)
    m = np.asarray(mask)
    out = x.copy()
    coastal = x[m]
    if coastal.shape[0] == 0:
        return out
    q = coastal @ wq + bq
    k = coastal @ wk + bk
    v = coastal @ wv + bv
    d = x.shape[1] // NUM_HEADS
    heads = []
    for h in range(NUM_HEADS):
        qh = q[:, h * d:(h + 1) * d]
        kh = k[:, h * d:(h + 1) * d]
        vh = v[:, h * d:(h + 1) * d]
        s = (qh @ kh.T) / np.float32(np.sqrt(d))
        s = s - s.max(axis=-1, keepdims=True)
        p = np.exp(s)
        p = p / p.sum(axis=-1, keepdims=True)
        heads.append(p @ vh)
    attn = np.concatenate(heads, axis=-1) @ wo + bo
    out[m] = attn
    return out


if __name__ == "__main__":
    # Module default hidden_dim=512; use small shapes (multiple of num_heads=8, 256-aligned
    # tiles, >=2 query blocks) for the self-contained example.
    N, H = 512, 128
    key = jax.random.PRNGKey(0)
    keys = jax.random.split(key, 14)
    x = jax.random.normal(keys[0], (N, H), jnp.float32)
    # Clustered coastal mask: the second half of the nodes has no coastal rows, so the
    # corresponding key/projection blocks exercise the count==0 skip path.
    mask_lo = jax.random.bernoulli(keys[1], 0.4, (N // 2,))
    mask_lo = mask_lo.at[0].set(True)                       # guarantee len(coastal) > 0
    coastal_mask = jnp.concatenate([mask_lo, jnp.zeros((N // 2,), dtype=bool)])

    def w(k):
        return jax.random.normal(k, (H, H), jnp.float32) / np.sqrt(H)

    def b(k):
        return 0.02 * jax.random.normal(k, (1, H), jnp.float32)

    pk = keys[2:]
    params = (w(pk[0]), b(pk[1]), w(pk[2]), b(pk[3]),     # coastal_encoder (unused)
              w(pk[4]), b(pk[5]), w(pk[6]), b(pk[7]),     # Wq,bq, Wk,bk
              w(pk[8]), b(pk[9]), w(pk[10]), b(pk[11]))   # Wv,bv, Wo,bo (out_proj)

    # Host copies for the reference BEFORE running the kernel: pass B donates node_features
    # via input_output_aliases, which invalidates the device array afterwards.
    x_np = np.asarray(x)
    mask_np = np.asarray(coastal_mask)
    ref = _reference_forward(x_np, mask_np, params)

    out = coastal_boundary_attention(x, coastal_mask, params, block_q=256, block_k=256)
    out = jax.block_until_ready(out)

    # bf16 MXU inputs (f32 accumulation) -> compare against the f32 reference with a
    # bf16-appropriate tolerance.
    np.testing.assert_allclose(np.asarray(out), ref, rtol=2e-2, atol=2e-2)
    print("KERNEL_OK")
</pallas_src>

<mosaic_0001>
module attributes {stable_mosaic.version = 11 : i64} {
  func.func @_kv_proj_kernel(%arg0: i32, %arg1: memref<2xi32, #tpu.memory_space<smem>>, %arg2: memref<256x128xf32, #tpu.memory_space<vmem>>, %arg3: memref<128x128xbf16, #tpu.memory_space<vmem>>, %arg4: memref<1x128xf32, #tpu.memory_space<vmem>>, %arg5: memref<128x128xbf16, #tpu.memory_space<vmem>>, %arg6: memref<1x128xf32, #tpu.memory_space<vmem>>, %arg7: memref<128x256xbf16, #tpu.memory_space<vmem>>, %arg8: memref<256x128xbf16, #tpu.memory_space<vmem>>) attributes {dimension_semantics = [#tpu.dimension_semantics<parallel>], iteration_bounds = array<i64: 2>, scalar_prefetch = 1 : i64, scratch_operands = 0 : i64, tpu.core_type = #tpu.core_type<tc>, window_params = [{transform_indices = @transform_0, window_bounds = array<i64: 256, 128>}, {pipeline_mode = #tpu.pipeline_mode<synchronous>, transform_indices = @transform_1, window_bounds = array<i64: 128, 128>}, {pipeline_mode = #tpu.pipeline_mode<synchronous>, transform_indices = @transform_2, window_bounds = array<i64: 1, 128>}, {pipeline_mode = #tpu.pipeline_mode<synchronous>, transform_indices = @transform_3, window_bounds = array<i64: 128, 128>}, {pipeline_mode = #tpu.pipeline_mode<synchronous>, transform_indices = @transform_4, window_bounds = array<i64: 1, 128>}, {transform_indices = @transform_5, window_bounds = array<i64: 128, 256>}, {transform_indices = @transform_6, window_bounds = array<i64: 256, 128>}]} {
    %0 = arith.index_cast %arg0 : i32 to index
    %1 = memref.load %arg1[%0] : memref<2xi32, #tpu.memory_space<smem>>
    %c0_i32 = arith.constant 0 : i32
    %2 = arith.cmpi sgt, %1, %c0_i32 : i32
    %3 = arith.extui %2 : i1 to i32
    %c0_i32_0 = arith.constant 0 : i32
    %4 = arith.cmpi ne, %3, %c0_i32_0 : i32
    scf.if %4 {
      %c0 = arith.constant 0 : index
      %c0_1 = arith.constant 0 : index
      %5 = vector.load %arg2[%c0, %c0_1] : memref<256x128xf32, #tpu.memory_space<vmem>>, vector<256x128xf32>
      %6 = arith.truncf %5 : vector<256x128xf32> to vector<256x128xbf16>
      %c0_2 = arith.constant 0 : index
      %c0_3 = arith.constant 0 : index
      %7 = vector.load %arg3[%c0_2, %c0_3] : memref<128x128xbf16, #tpu.memory_space<vmem>>, vector<128x128xbf16>
      %cst = arith.constant dense<0.000000e+00> : vector<256x128xf32>
      %8 = tpu.matmul %6, %7, %cst {dimension_numbers = #tpu.dot_dimension_numbers<[1], [0], [0], [1], [0, 0, 1, 1], [], []>} : vector<256x128xbf16>, vector<128x128xbf16>, vector<256x128xf32> -> vector<256x128xf32>
      %c0_4 = arith.constant 0 : index
      %c0_5 = arith.constant 0 : index
      %9 = vector.load %arg4[%c0_4, %c0_5] : memref<1x128xf32, #tpu.memory_space<vmem>>, vector<1x128xf32>
      %10 = vector.broadcast %9 : vector<1x128xf32> to vector<256x128xf32>
      %11 = arith.addf %8, %10 : vector<256x128xf32>
      %12 = tpu.transpose %11, [1, 0] : vector<256x128xf32> -> vector<128x256xf32>
      %13 = arith.truncf %12 : vector<128x256xf32> to vector<128x256xbf16>
      %c0_6 = arith.constant 0 : index
      %c0_7 = arith.constant 0 : index
      %14 = vector.load %arg7[%c0_6, %c0_7] : memref<128x256xbf16, #tpu.memory_space<vmem>>, vector<128x256xbf16>
      tpu.vector_store %arg7[%c0_6, %c0_7], %13 {strides = array<i32>} : memref<128x256xbf16, #tpu.memory_space<vmem>>, vector<128x256xbf16>,
      %c0_8 = arith.constant 0 : index
      %c0_9 = arith.constant 0 : index
      %15 = vector.load %arg5[%c0_8, %c0_9] : memref<128x128xbf16, #tpu.memory_space<vmem>>, vector<128x128xbf16>
      %cst_10 = arith.constant dense<0.000000e+00> : vector<256x128xf32>
      %16 = tpu.matmul %6, %15, %cst_10 {dimension_numbers = #tpu.dot_dimension_numbers<[1], [0], [0], [1], [0, 0, 1, 1], [], []>} : vector<256x128xbf16>, vector<128x128xbf16>, vector<256x128xf32> -> vector<256x128xf32>
      %c0_11 = arith.constant 0 : index
      %c0_12 = arith.constant 0 : index
      %17 = vector.load %arg6[%c0_11, %c0_12] : memref<1x128xf32, #tpu.memory_space<vmem>>, vector<1x128xf32>
      %18 = vector.broadcast %17 : vector<1x128xf32> to vector<256x128xf32>
      %19 = arith.addf %16, %18 : vector<256x128xf32>
      %20 = arith.truncf %19 : vector<256x128xf32> to vector<256x128xbf16>
      %c0_13 = arith.constant 0 : index
      %c0_14 = arith.constant 0 : index
      %21 = vector.load %arg8[%c0_13, %c0_14] : memref<256x128xbf16, #tpu.memory_space<vmem>>, vector<256x128xbf16>
      tpu.vector_store %arg8[%c0_13, %c0_14], %20 {strides = array<i32>} : memref<256x128xbf16, #tpu.memory_space<vmem>>, vector<256x128xbf16>,
    } else {
    }
    return
  }
  func.func @transform_0(%arg0: i32, %arg1: memref<2xi32, #tpu.memory_space<smem>>) -> (i32, i32) {
    %c0_i32 = arith.constant 0 : i32
    %c0_i32_0 = arith.constant 0 : i32
    return %arg0, %c0_i32 : i32, i32
  }
  func.func @transform_1(%arg0: i32, %arg1: memref<2xi32, #tpu.memory_space<smem>>) -> (i32, i32) {
    %c0_i32 = arith.constant 0 : i32
    %c0_i32_0 = arith.constant 0 : i32
    %c0_i32_1 = arith.constant 0 : i32
    return %c0_i32, %c0_i32_0 : i32, i32
  }
  func.func @transform_2(%arg0: i32, %arg1: memref<2xi32, #tpu.memory_space<smem>>) -> (i32, i32) {
    %c0_i32 = arith.constant 0 : i32
    %c0_i32_0 = arith.constant 0 : i32
    %c0_i32_1 = arith.constant 0 : i32
    return %c0_i32, %c0_i32_0 : i32, i32
  }
  func.func @transform_3(%arg0: i32, %arg1: memref<2xi32, #tpu.memory_space<smem>>) -> (i32, i32) {
    %c0_i32 = arith.constant 0 : i32
    %c0_i32_0 = arith.constant 0 : i32
    %c0_i32_1 = arith.constant 0 : i32
    return %c0_i32, %c0_i32_0 : i32, i32
  }
  func.func @transform_4(%arg0: i32, %arg1: memref<2xi32, #tpu.memory_space<smem>>) -> (i32, i32) {
    %c0_i32 = arith.constant 0 : i32
    %c0_i32_0 = arith.constant 0 : i32
    %c0_i32_1 = arith.constant 0 : i32
    return %c0_i32, %c0_i32_0 : i32, i32
  }
  func.func @transform_5(%arg0: i32, %arg1: memref<2xi32, #tpu.memory_space<smem>>) -> (i32, i32) {
    %c0_i32 = arith.constant 0 : i32
    %c0_i32_0 = arith.constant 0 : i32
    return %c0_i32, %arg0 : i32, i32
  }
  func.func @transform_6(%arg0: i32, %arg1: memref<2xi32, #tpu.memory_space<smem>>) -> (i32, i32) {
    %c0_i32 = arith.constant 0 : i32
    %c0_i32_0 = arith.constant 0 : i32
    return %arg0, %c0_i32 : i32, i32
  }
}

</mosaic_0001>

<llo_original>
// kernel: tpu_custom_call.1
$region0: #{tpu_custom_call.1}
  #allocation0 [shape = 'u32[]', space=smem, size = 0x4, offset = 0x4, fixed_abs, tag = 'smem constant byte address 0x4 - core index']
  #allocation1 [shape = 'u32[144,128]{1,0:T(1,128)}', space=vmem, size = 0x12000, scoped, tag = 'internal scratch']
  #allocation2 [shape = 's32[1]{0}', space=sflag, size = 0x4, scoped, tag = 'scoped memory for tpu_custom_call.1']
  #allocation3 [shape = 'u8[512]{0}', space=smem, size = 0x200, scoped, tag = 'prefetched SMEM operand 0']
  %s0 = inlined_call_operand.hbm [shape: s32[2], index: 0, kind: input, shape index: {}]
  %s1 = inlined_call_operand.hbm [shape: f32[512,128], index: 1, kind: input, shape index: {}]
  %s2 = inlined_call_operand.hbm [shape: bf16[128,128], index: 2, kind: input, shape index: {}]
  %s3 = inlined_call_operand.vmem [shape: f32[1,128], index: 3, kind: input, shape index: {}]
  %s4 = inlined_call_operand.hbm [shape: bf16[128,128], index: 4, kind: input, shape index: {}]
  %s5 = inlined_call_operand.vmem [shape: f32[1,128], index: 5, kind: input, shape index: {}]
  %s6 = inlined_call_operand.hbm [shape: bf16[128,512], index: 6, kind: output, shape index: {0}]
  %s7 = inlined_call_operand.hbm [shape: bf16[512,128], index: 7, kind: output, shape index: {1}]
  %8 = xla_tuple %s6, %s7
  %s9 = sld [smem:[#allocation0]]
  $region77: #{tpu_custom_call.1} parent=0
    _
  %s11 = ssub.s32 1, %s9
  %s12 = scalar_select 0, %s11, %s9
  %14 = dma.hbm_to_smem %s0, 16, [#allocation3], [#allocation2]
  %15 = dma.done [#allocation2], 16
  %16 = sfence
  $region1: #{tpu_custom_call.1} parent=0
    #allocation4 [shape = 'u8[262144]{0}', space=vmem, size = 0x40000, scoped, tag = 'input window, operand 1']
    #allocation5 [shape = 's32[2]{0}', space=sflag, size = 0x8, scoped, tag = 'scoped memory for tpu_custom_call.1']
    #allocation6 [shape = 's32[2]{0}', space=sflag, size = 0x8, scoped, tag = 'scoped memory for tpu_custom_call.1']
    #allocation7 [shape = 'u8[32768]{0}', space=vmem, size = 0x8000, scoped, tag = 'input window, operand 2, single buffered']
    #allocation8 [shape = 's32[1]{0}', space=sflag, size = 0x4, scoped, tag = 'scoped memory for tpu_custom_call.1']
    #allocation9 [shape = 'u8[32768]{0}', space=vmem, size = 0x8000, scoped, tag = 'input window, operand 4, single buffered']
    #allocation10 [shape = 'u8[131072]{0}', space=vmem, size = 0x20000, scoped, tag = 'output window, operand 0']
    #allocation11 [shape = 'u8[131072]{0}', space=vmem, size = 0x20000, scoped, tag = 'output window, operand 1']
    #allocation12 [shape = 's32[2]{0}', space=sflag, size = 0x8, scoped, tag = 'scoped memory for tpu_custom_call.1']
    %17 = vsyncpa [#allocation5], 0
    %s18 = scalar_lea.sflag [#allocation5], 1
    %19 = vsyncpa %s18, 0
    %20 = vsyncpa [#allocation8], 0
    %21 = vsyncpa [#allocation6], 0
    %s22 = scalar_lea.sflag [#allocation6], 1
    %23 = vsyncpa %s22, 0
    %24 = vsyncpa [#allocation12], 0
    %s25 = scalar_lea.sflag [#allocation12], 1
    %26 = vsyncpa %s25, 0
    loop: start=0, step=1, limit=4
    $region2: #{tpu_custom_call.1} parent=1 // loop_pre_header
      _
    $region3: #{tpu_custom_call.1} parent=1 // loop_header
      %s28 = sphi 0, %s32
      %p29 = scmp.ge.s32.totalorder %s28, 4
      %s38 = sphi 0, %s40
      %s41 = sphi 0, %s38
      %s42 = sphi 0, %s41
      %s58 = sphi 0, %s42
      %s62 = sphi 0, %s62
      %s64 = sphi 0, %s62
      %s65 = sphi 0, %s64
      %s79 = sphi 0, %s65
      %s83 = sphi 0, %s83
      %s85 = sphi 0, %s83
      %s86 = sphi 0, %s85
      %s100 = sphi 0, %s86
      %s104 = sphi 0, %s104
      %s106 = sphi 0, %s104
      %s107 = sphi 0, %s106
      %s121 = sphi 0, %s107
      %s125 = sphi 0, %s125
      %s127 = sphi 0, %s125
      %s128 = sphi 0, %s127
      %s142 = sphi 0, %s128
      %s148 = sphi 0, %s150
      %s151 = sphi 0, %s148
      %s152 = sphi 0, %s151
      %s168 = sphi 0, %s152
      %s174 = sphi 0, %s176
      %s177 = sphi 0, %s174
      %s178 = sphi 0, %s177
      %s194 = sphi 0, %s178
    $region4: #{tpu_custom_call.1} parent=1 // loop_header_branch
      %31 = sbr.rel (%p29) target = $region8
    $region5: #{tpu_custom_call.1} parent=1 // loop_body
      %s33 = ssub.s32 %s28, 1
      %s34 = ssub.s32 %s28, 2
      %s35 = sadd.s32 %s28, 1
      %s36 = ssub.s32 %s28, %s35
      %p37 = scmp.eq.s32.totalorder %s36, 0
      %s39 = sadd.s32 %s38, 1
      %s40 = scalar_select %p37, %s38, %s39
      %p43 = pneg %p37
      %p44 = scmp.eq.s32.totalorder %s28, 1
      %p45 = por %p43, %p44
      %p46 = scmp.ne.s32.totalorder %s38, %s41
      %p47 = scmp.eq.s32.totalorder %s28, 0
      %p48 = por %p46, %p47
      %p49 = scmp.ne.s32.totalorder %s38, %s41
      %p50 = scmp.eq.s32.totalorder %s33, 1
      %p51 = por %p49, %p50
      %p52 = scmp.ne.s32.totalorder %s41, %s42
      %p53 = scmp.eq.s32.totalorder %s33, 0
      %p54 = por %p52, %p53
      %p55 = scmp.ne.s32.totalorder %s41, %s42
      %p56 = scmp.eq.s32.totalorder %s34, 1
      %p57 = por %p55, %p56
      %p59 = scmp.ne.s32.totalorder %s42, %s58
      %p60 = scmp.eq.s32.totalorder %s34, 0
      %p61 = por %p59, %p60
      %s63 = sadd.s32 %s62, 1
      %p66 = scmp.eq.s32.totalorder %s28, 1
      %p67 = scmp.ne.s32.totalorder %s62, %s64
      %p68 = scmp.eq.s32.totalorder %s28, 0
      %p69 = por %p67, %p68
      %p70 = scmp.ne.s32.totalorder %s62, %s64
      %p71 = scmp.eq.s32.totalorder %s33, 1
      %p72 = por %p70, %p71
      %p73 = scmp.ne.s32.totalorder %s64, %s65
      %p74 = scmp.eq.s32.totalorder %s33, 0
      %p75 = por %p73, %p74
      %p76 = scmp.ne.s32.totalorder %s64, %s65
      %p77 = scmp.eq.s32.totalorder %s34, 1
      %p78 = por %p76, %p77
      %p80 = scmp.ne.s32.totalorder %s65, %s79
      %p81 = scmp.eq.s32.totalorder %s34, 0
      %p82 = por %p80, %p81
      %s84 = sadd.s32 %s83, 1
      %p87 = scmp.eq.s32.totalorder %s28, 1
      %p88 = scmp.ne.s32.totalorder %s83, %s85
      %p89 = scmp.eq.s32.totalorder %s28, 0
      %p90 = por %p88, %p89
      %p91 = scmp.ne.s32.totalorder %s83, %s85
      %p92 = scmp.eq.s32.totalorder %s33, 1
      %p93 = por %p91, %p92
      %p94 = scmp.ne.s32.totalorder %s85, %s86
      %p95 = scmp.eq.s32.totalorder %s33, 0
      %p96 = por %p94, %p95
      %p97 = scmp.ne.s32.totalorder %s85, %s86
      %p98 = scmp.eq.s32.totalorder %s34, 1
      %p99 = por %p97, %p98
      %p101 = scmp.ne.s32.totalorder %s86, %s100
      %p102 = scmp.eq.s32.totalorder %s34, 0
      %p103 = por %p101, %p102
      %s105 = sadd.s32 %s104, 1
      %p108 = scmp.eq.s32.totalorder %s28, 1
      %p109 = scmp.ne.s32.totalorder %s104, %s106
      %p110 = scmp.eq.s32.totalorder %s28, 0
      %p111 = por %p109, %p110
      %p112 = scmp.ne.s32.totalorder %s104, %s106
      %p113 = scmp.eq.s32.totalorder %s33, 1
      %p114 = por %p112, %p113
      %p115 = scmp.ne.s32.totalorder %s106, %s107
      %p116 = scmp.eq.s32.totalorder %s33, 0
      %p117 = por %p115, %p116
      %p118 = scmp.ne.s32.totalorder %s106, %s107
      %p119 = scmp.eq.s32.totalorder %s34, 1
      %p120 = por %p118, %p119
      %p122 = scmp.ne.s32.totalorder %s107, %s121
      %p123 = scmp.eq.s32.totalorder %s34, 0
      %p124 = por %p122, %p123
      %s126 = sadd.s32 %s125, 1
      %p129 = scmp.eq.s32.totalorder %s28, 1
      %p130 = scmp.ne.s32.totalorder %s125, %s127
      %p131 = scmp.eq.s32.totalorder %s28, 0
      %p132 = por %p130, %p131
      %p133 = scmp.ne.s32.totalorder %s125, %s127
      %p134 = scmp.eq.s32.totalorder %s33, 1
      %p135 = por %p133, %p134
      %p136 = scmp.ne.s32.totalorder %s127, %s128
      %p137 = scmp.eq.s32.totalorder %s33, 0
      %p138 = por %p136, %p137
      %p139 = scmp.ne.s32.totalorder %s127, %s128
      %p140 = scmp.eq.s32.totalorder %s34, 1
      %p141 = por %p139, %p140
      %p143 = scmp.ne.s32.totalorder %s128, %s142
      %p144 = scmp.eq.s32.totalorder %s34, 0
      %p145 = por %p143, %p144
      %s146 = ssub.s32 %s28, %s35
      %p147 = scmp.eq.s32.totalorder %s146, 0
      %s149 = sadd.s32 %s148, 1
      %s150 = scalar_select %p147, %s148, %s149
      %p153 = pneg %p147
      %p154 = scmp.eq.s32.totalorder %s28, 1
      %p155 = por %p153, %p154
      %p156 = scmp.ne.s32.totalorder %s148, %s151
      %p157 = scmp.eq.s32.totalorder %s28, 0
      %p158 = por %p156, %p157
      %p159 = scmp.ne.s32.totalorder %s148, %s151
      %p160 = scmp.eq.s32.totalorder %s33, 1
      %p161 = por %p159, %p160
      %p162 = scmp.ne.s32.totalorder %s151, %s152
      %p163 = scmp.eq.s32.totalorder %s33, 0
      %p164 = por %p162, %p163
      %p165 = scmp.ne.s32.totalorder %s151, %s152
      %p166 = scmp.eq.s32.totalorder %s34, 1
      %p167 = por %p165, %p166
      %p169 = scmp.ne.s32.totalorder %s152, %s168
      %p170 = scmp.eq.s32.totalorder %s34, 0
      %p171 = por %p169, %p170
      %s172 = ssub.s32 %s28, %s35
      %p173 = scmp.eq.s32.totalorder %s172, 0
      %s175 = sadd.s32 %s174, 1
      %s176 = scalar_select %p173, %s174, %s175
      %p179 = pneg %p173
      %p180 = scmp.eq.s32.totalorder %s28, 1
      %p181 = por %p179, %p180
      %p182 = scmp.ne.s32.totalorder %s174, %s177
      %p183 = scmp.eq.s32.totalorder %s28, 0
      %p184 = por %p182, %p183
      %p185 = scmp.ne.s32.totalorder %s174, %s177
      %p186 = scmp.eq.s32.totalorder %s33, 1
      %p187 = por %p185, %p186
      %p188 = scmp.ne.s32.totalorder %s177, %s178
      %p189 = scmp.eq.s32.totalorder %s33, 0
      %p190 = por %p188, %p189
      %p191 = scmp.ne.s32.totalorder %s177, %s178
      %p192 = scmp.eq.s32.totalorder %s34, 1
      %p193 = por %p191, %p192
      %p195 = scmp.ne.s32.totalorder %s178, %s194
      %p196 = scmp.eq.s32.totalorder %s34, 0
      %p197 = por %p195, %p196
      %p198 = scmp.le.s32.totalorder 1, %s28
      %p199 = scmp.lt.s32.totalorder %s28, 3
      %p200 = pnand %p198, %p199
      %p201 = pneg %p200
      // Predicated region
      $region9: #{tpu_custom_call.1} parent=5 // pred_check
        _
      $region10: #{tpu_custom_call.1} parent=5 // pred_check_branch
        %203 = sbr.rel (%p200) target = $region12
      $region11: #{tpu_custom_call.1} parent=5 // pred_region
        %s204 = ssub.s32 %s28, 1
        // Predicated region
        $region13: #{tpu_custom_call.1} parent=11 // pred_check
          %p205 = pneg %p75
        $region14: #{tpu_custom_call.1} parent=11 // pred_check_branch
          %207 = sbr.rel (%p205) target = $region16
        $region15: #{tpu_custom_call.1} parent=11 // pred_region
          %s209 = ssub.s32 1024, 1024
          %210 = vsyncadd [#allocation8], %s209
          %s211 = sshll.u32 [#allocation7], 4
          %s212 = int_to_ptr.vmem [resolvable:$true] %s211
          %217 = dma.hbm_to_vmem [thread:$0]  %s2, 1024, %s212, [#allocation8], 64, 64, 4
        $region16: #{tpu_custom_call.1} parent=11 // pred_fallthru
          _
        // Predicated region
        $region17: #{tpu_custom_call.1} parent=11 // pred_check
          %p218 = pneg %p96
        $region18: #{tpu_custom_call.1} parent=11 // pred_check_branch
          %220 = sbr.rel (%p218) target = $region20
        $region19: #{tpu_custom_call.1} parent=11 // pred_region
          _
        $region20: #{tpu_custom_call.1} parent=11 // pred_fallthru
          _
        // Predicated region
        $region21: #{tpu_custom_call.1} parent=11 // pred_check
          %p221 = pneg %p117
        $region22: #{tpu_custom_call.1} parent=11 // pred_check_branch
          %223 = sbr.rel (%p221) target = $region24
        $region23: #{tpu_custom_call.1} parent=11 // pred_region
          %s225 = ssub.s32 1024, 1024
          %226 = vsyncadd [#allocation8], %s225
          %s227 = sshll.u32 [#allocation9], 4
          %s228 = int_to_ptr.vmem [resolvable:$true] %s227
          %233 = dma.hbm_to_vmem [thread:$0]  %s4, 1024, %s228, [#allocation8], 64, 64, 4
        $region24: #{tpu_custom_call.1} parent=11 // pred_fallthru
          _
        // Predicated region
        $region25: #{tpu_custom_call.1} parent=11 // pred_check
          %p234 = pneg %p138
        $region26: #{tpu_custom_call.1} parent=11 // pred_check_branch
          %236 = sbr.rel (%p234) target = $region28
        $region27: #{tpu_custom_call.1} parent=11 // pred_region
          _
        $region28: #{tpu_custom_call.1} parent=11 // pred_fallthru
          _
      $region12: #{tpu_custom_call.1} parent=5 // pred_fallthru
        _
      %p237 = scmp.lt.s32.totalorder %s28, 2
      // Predicated region
      $region29: #{tpu_custom_call.1} parent=5 // pred_check
        %p238 = pneg %p237
      $region30: #{tpu_custom_call.1} parent=5 // pred_check_branch
        %240 = sbr.rel (%p238) target = $region32
      $region31: #{tpu_custom_call.1} parent=5 // pred_region
        // Predicated region
        $region33: #{tpu_custom_call.1} parent=31 // pred_check
          %p241 = pneg %p48
        $region34: #{tpu_custom_call.1} parent=31 // pred_check_branch
          %243 = sbr.rel (%p241) target = $region36
        $region35: #{tpu_custom_call.1} parent=31 // pred_region
          %s244 = sand.u32 %s38, 1
          %s245 = scalar_lea.sflag [#allocation5], %s244
          %s246 = sand.u32 %s38, 1
          %s247 = smul.addr %s246, 256
          %s248 = scalar_lea.vmem [#allocation4], %s247
          %s249 = smul.u32 32, %s28
          %s251 = ssub.s32 4096, 4096
          %252 = vsyncadd %s245, %s251
          %s253 = smul.addr %s249, 128
          %s254 = scalar_lea.hbm %s1, %s253
          %s255 = sshll.u32 %s248, 4
          %s256 = int_to_ptr.vmem [resolvable:$true] %s255
          %261 = dma.hbm_to_vmem [thread:$0]  %s254, 4096, %s256, %s245, 128, 128, 8
        $region36: #{tpu_custom_call.1} parent=31 // pred_fallthru
          _
      $region32: #{tpu_custom_call.1} parent=5 // pred_fallthru
        _
      %p262 = scmp.le.s32.totalorder 1, %s28
      %p263 = scmp.lt.s32.totalorder %s28, 3
      %p264 = pnand %p262, %p263
      %p265 = pneg %p264
      // Predicated region
      $region37: #{tpu_custom_call.1} parent=5 // pred_check
        _
      $region38: #{tpu_custom_call.1} parent=5 // pred_check_branch
        %267 = sbr.rel (%p264) target = $region40
      $region39: #{tpu_custom_call.1} parent=5 // pred_region
        %s268 = ssub.s32 %s28, 1
        %s269 = sand.u32 %s41, 1
        %s270 = scalar_lea.sflag [#allocation5], %s269
        %s271 = sand.u32 %s41, 1
        %s272 = smul.addr %s271, 256
        %s273 = scalar_lea.vmem [#allocation4], %s272
        // Predicated region
        $region41: #{tpu_custom_call.1} parent=39 // pred_check
          %p274 = pneg %p54
        $region42: #{tpu_custom_call.1} parent=39 // pred_check_branch
          %276 = sbr.rel (%p274) target = $region44
        $region43: #{tpu_custom_call.1} parent=39 // pred_region
          %277 = dma.done %s270, 4096
        $region44: #{tpu_custom_call.1} parent=39 // pred_fallthru
          _
        // Predicated region
        $region45: #{tpu_custom_call.1} parent=39 // pred_check
          %p278 = pneg %p75
        $region46: #{tpu_custom_call.1} parent=39 // pred_check_branch
          %280 = sbr.rel (%p278) target = $region48
        $region47: #{tpu_custom_call.1} parent=39 // pred_region
          %281 = dma.done [#allocation8], 1024
        $region48: #{tpu_custom_call.1} parent=39 // pred_fallthru
          _
        // Predicated region
        $region49: #{tpu_custom_call.1} parent=39 // pred_check
          %p282 = pneg %p117
        $region50: #{tpu_custom_call.1} parent=39 // pred_check_branch
          %284 = sbr.rel (%p282) target = $region52
        $region51: #{tpu_custom_call.1} parent=39 // pred_region
          %285 = dma.done [#allocation8], 1024
        $region52: #{tpu_custom_call.1} parent=39 // pred_fallthru
          _
        %s286 = sand.u32 %s41, 1
        %s287 = scalar_lea.sflag [#allocation5], %s286
        %s288 = sand.u32 %s41, 1
        %s289 = smul.addr %s288, 256
        %s290 = scalar_lea.vmem [#allocation4], %s289
        %p291 = pneg %p54
        %p292 = pneg %p51
        %p293 = pneg %p75
        %p294 = pneg %p72
        %p295 = pneg %p96
        %p296 = pneg %p93
        %p297 = pneg %p117
        %p298 = pneg %p114
        %p299 = pneg %p138
        %p300 = pneg %p135
        %p301 = pneg %p164
        %p302 = pneg %p161
        %s303 = sand.u32 %s151, 1
        %s304 = scalar_lea.sflag [#allocation6], %s303
        %s305 = sand.u32 %s151, 1
        %s306 = smul.addr %s305, 128
        %s307 = scalar_lea.vmem [#allocation10], %s306
        %p308 = pneg %p190
        %p309 = pneg %p187
        %s310 = sand.u32 %s177, 1
        %s311 = scalar_lea.sflag [#allocation12], %s310
        %s312 = sand.u32 %s177, 1
        %s313 = smul.addr %s312, 128
        %s314 = scalar_lea.vmem [#allocation11], %s313
        %s315 = smul.u32 32, %s33
        %s316 = smul.u32 2, %s33
        %s317 = smul.u32 32, %s33
        %s319 = sld [smem:[#allocation3 + %s33]]
        %p320 = scmp.gt.s32.totalorder %s319, 0
        // Predicated region
        $region53: #{tpu_custom_call.1} parent=39 // pred_check
          %p321 = pneg %p320
        $region54: #{tpu_custom_call.1} parent=39 // pred_check_branch
          %323 = sbr.rel (%p321) target = $region56
        $region55: #{tpu_custom_call.1} parent=39 // pred_region
          %v324 = vld [vmem:[%s273] sm:$0xff]
          %v325 = vld [vmem:[%s273 + $0x8] sm:$0xff]
          %v326 = vld [vmem:[%s273 + $0x10] sm:$0xff]
          %v327 = vld [vmem:[%s273 + $0x18] sm:$0xff]
          %v328 = vld [vmem:[%s273 + $0x20] sm:$0xff]
          %v329 = vld [vmem:[%s273 + $0x28] sm:$0xff]
          %v330 = vld [vmem:[%s273 + $0x30] sm:$0xff]
          %v331 = vld [vmem:[%s273 + $0x38] sm:$0xff]
          %v332 = vld [vmem:[%s273 + $0x40] sm:$0xff]
          %v333 = vld [vmem:[%s273 + $0x48] sm:$0xff]
          %v334 = vld [vmem:[%s273 + $0x50] sm:$0xff]
          %v335 = vld [vmem:[%s273 + $0x58] sm:$0xff]
          %v336 = vld [vmem:[%s273 + $0x60] sm:$0xff]
          %v337 = vld [vmem:[%s273 + $0x68] sm:$0xff]
          %v338 = vld [vmem:[%s273 + $0x70] sm:$0xff]
          %v339 = vld [vmem:[%s273 + $0x78] sm:$0xff]
          %v340 = vld [vmem:[%s273 + $0x80] sm:$0xff]
          %v341 = vld [vmem:[%s273 + $0x88] sm:$0xff]
          %v342 = vld [vmem:[%s273 + $0x90] sm:$0xff]
          %v343 = vld [vmem:[%s273 + $0x98] sm:$0xff]
          %v344 = vld [vmem:[%s273 + $0xa0] sm:$0xff]
          %v345 = vld [vmem:[%s273 + $0xa8] sm:$0xff]
          %v346 = vld [vmem:[%s273 + $0xb0] sm:$0xff]
          %v347 = vld [vmem:[%s273 + $0xb8] sm:$0xff]
          %v348 = vld [vmem:[%s273 + $0xc0] sm:$0xff]
          %v349 = vld [vmem:[%s273 + $0xc8] sm:$0xff]
          %v350 = vld [vmem:[%s273 + $0xd0] sm:$0xff]
          %v351 = vld [vmem:[%s273 + $0xd8] sm:$0xff]
          %v352 = vld [vmem:[%s273 + $0xe0] sm:$0xff]
          %v353 = vld [vmem:[%s273 + $0xe8] sm:$0xff]
          %v354 = vld [vmem:[%s273 + $0xf0] sm:$0xff]
          %v355 = vld [vmem:[%s273 + $0xf8] sm:$0xff]
          %v356 = vpack.c.bf16 %v325, %v324
          %v357 = vpack.c.bf16 %v327, %v326
          %v358 = vpack.c.bf16 %v329, %v328
          %v359 = vpack.c.bf16 %v331, %v330
          %v360 = vpack.c.bf16 %v333, %v332
          %v361 = vpack.c.bf16 %v335, %v334
          %v362 = vpack.c.bf16 %v337, %v336
          %v363 = vpack.c.bf16 %v339, %v338
          %v364 = vpack.c.bf16 %v341, %v340
          %v365 = vpack.c.bf16 %v343, %v342
          %v366 = vpack.c.bf16 %v345, %v344
          %v367 = vpack.c.bf16 %v347, %v346
          %v368 = vpack.c.bf16 %v349, %v348
          %v369 = vpack.c.bf16 %v351, %v350
          %v370 = vpack.c.bf16 %v353, %v352
          %v371 = vpack.c.bf16 %v355, %v354
          %v372 = vld [vmem:[#allocation7] sm:$0xf]
          %v373 = vld [vmem:[#allocation7 + $0x4] sm:$0xf]
          %v374 = vld [vmem:[#allocation7 + $0x8] sm:$0xf]
          %v375 = vld [vmem:[#allocation7 + $0xc] sm:$0xf]
          %v376 = vld [vmem:[#allocation7 + $0x10] sm:$0xf]
          %v377 = vld [vmem:[#allocation7 + $0x14] sm:$0xf]
          %v378 = vld [vmem:[#allocation7 + $0x18] sm:$0xf]
          %v379 = vld [vmem:[#allocation7 + $0x1c] sm:$0xf]
          %v380 = vld [vmem:[#allocation7 + $0x20] sm:$0xf]
          %v381 = vld [vmem:[#allocation7 + $0x24] sm:$0xf]
          %v382 = vld [vmem:[#allocation7 + $0x28] sm:$0xf]
          %v383 = vld [vmem:[#allocation7 + $0x2c] sm:$0xf]
          %v384 = vld [vmem:[#allocation7 + $0x30] sm:$0xf]
          %v385 = vld [vmem:[#allocation7 + $0x34] sm:$0xf]
          %v386 = vld [vmem:[#allocation7 + $0x38] sm:$0xf]
          %v387 = vld [vmem:[#allocation7 + $0x3c] sm:$0xf]
          %v388 = vld [vmem:[%s3] sm:$0x1]
          %v390 = vlaneseq
          %v391 = vshrl.u32 %v390, 7
          %v392 = vsub.s32 0, %v391
          %v393 = vrot.slane %v388, %v392
          %v411 = vunpack.c.l.b16 %v372
          %v412 = vunpack.c.l.b16 %v373
          %v413 = vunpack.c.l.b16 %v374
          %v414 = vunpack.c.l.b16 %v375
          %v415 = vunpack.c.l.b16 %v376
          %v416 = vunpack.c.l.b16 %v377
          %v417 = vunpack.c.l.b16 %v378
          %v418 = vunpack.c.l.b16 %v379
          %v419 = vunpack.c.l.b16 %v380
          %v420 = vunpack.c.l.b16 %v381
          %v421 = vunpack.c.l.b16 %v382
          %v422 = vunpack.c.l.b16 %v383
          %v423 = vunpack.c.l.b16 %v384
          %v424 = vunpack.c.l.b16 %v385
          %v425 = vunpack.c.l.b16 %v386
          %v426 = vunpack.c.l.b16 %v387
          %v427 = vpack.c.b16 %v412, %v411
          %v428 = vpack.c.b16 %v414, %v413
          %v429 = vpack.c.b16 %v416, %v415
          %v430 = vpack.c.b16 %v418, %v417
          %v431 = vpack.c.b16 %v420, %v419
          %v432 = vpack.c.b16 %v422, %v421
          %v433 = vpack.c.b16 %v424, %v423
          %v434 = vpack.c.b16 %v426, %v425
          %443 = vmatprep.subr.bf16.mxu0 0
          %444 = vmatpush1.bf16.msra.mxu0 %v427
          %445 = vmatprep.subr.bf16.mxu0 0
          %446 = vmatpush1.bf16.msra.mxu0 %v428
          %447 = vmatprep.subr.bf16.mxu0 0
          %448 = vmatpush1.bf16.msra.mxu0 %v429
          %449 = vmatprep.subr.bf16.mxu0 0
          %450 = vmatpush1.bf16.msra.mxu0 %v430
          %451 = vmatprep.subr.bf16.mxu0 0
          %452 = vmatpush1.bf16.msra.mxu0 %v431
          %453 = vmatprep.subr.bf16.mxu0 0
          %454 = vmatpush1.bf16.msra.mxu0 %v432
          %455 = vmatprep.subr.bf16.mxu0 0
          %456 = vmatpush1.bf16.msra.mxu0 %v433
          %457 = vmatprep.subr.bf16.mxu0 0
          %458 = vmatpush1.bf16.msra.mxu0 %v434
          %459 = vmatprep.subr.bf16.mxu0 0
          %460 = vmatpush1.bf16.msra.mxu0 0
          %461 = vmatprep.subr.bf16.mxu0 0
          %462 = vmatpush1.bf16.msra.mxu0 0
          %463 = vmatprep.subr.bf16.mxu0 0
          %464 = vmatpush1.bf16.msra.mxu0 0
          %465 = vmatprep.subr.bf16.mxu0 0
          %466 = vmatpush1.bf16.msra.mxu0 0
          %467 = vmatprep.subr.bf16.mxu0 0
          %468 = vmatpush1.bf16.msra.mxu0 0
          %469 = vmatprep.subr.bf16.mxu0 0
          %470 = vmatpush1.bf16.msra.mxu0 0
          %471 = vmatprep.subr.bf16.mxu0 0
          %472 = vmatpush1.bf16.msra.mxu0 0
          %473 = vmatprep.subr.bf16.mxu0 0
          %474 = vmatpush1.bf16.msra.mxu0 0
          %475 = vmatprep.mubr.bf16.mxu0 0
          %476 = vmatmul.mubr.bf16.gmra.mrb[0].mxu0 %v356
          %v477 = vpop.f32.mrb[0].mxu0
          %v478 = vadd.f32 %v393, %v477
          %v479 = vpop.f32.mrb[0].mxu0
          %v480 = vpop.f32.mrb[0].mxu0
          %v481 = vadd.f32 %v393, %v480
          %v482 = vpop.f32.mrb[0].mxu0
          %483 = vmatprep.mubr.bf16.mxu0 0
          %484 = vmatmul.mubr.bf16.gmra.mrb[0].mxu0 %v357
          %v485 = vpop.f32.mrb[0].mxu0
          %v486 = vadd.f32 %v393, %v485
          %v487 = vpop.f32.mrb[0].mxu0
          %v488 = vpop.f32.mrb[0].mxu0
          %v489 = vadd.f32 %v393, %v488
          %v490 = vpop.f32.mrb[0].mxu0
          %491 = vmatprep.mubr.bf16.mxu0 0
          %492 = vmatmul.mubr.bf16.gmra.mrb[0].mxu0 %v358
          %v493 = vpop.f32.mrb[0].mxu0
          %v494 = vadd.f32 %v393, %v493
          %v495 = vpop.f32.mrb[0].mxu0
          %v496 = vpop.f32.mrb[0].mxu0
          %v497 = vadd.f32 %v393, %v496
          %v498 = vpop.f32.mrb[0].mxu0
          %499 = vmatprep.mubr.bf16.mxu0 0
          %500 = vmatmul.mubr.bf16.gmra.mrb[0].mxu0 %v359
          %v501 = vpop.f32.mrb[0].mxu0
          %v502 = vadd.f32 %v393, %v501
          %v503 = vpop.f32.mrb[0].mxu0
          %v504 = vpop.f32.mrb[0].mxu0
          %v505 = vadd.f32 %v393, %v504
          %v506 = vpop.f32.mrb[0].mxu0
          %507 = vmatprep.mubr.bf16.mxu0 0
          %508 = vmatmul.mubr.bf16.gmra.mrb[0].mxu0 %v360
          %v509 = vpop.f32.mrb[0].mxu0
          %v510 = vadd.f32 %v393, %v509
          %v511 = vpop.f32.mrb[0].mxu0
          %v512 = vpop.f32.mrb[0].mxu0
          %v513 = vadd.f32 %v393, %v512
          %v514 = vpop.f32.mrb[0].mxu0
          %515 = vmatprep.mubr.bf16.mxu0 0
          %516 = vmatmul.mubr.bf16.gmra.mrb[0].mxu0 %v361
          %v517 = vpop.f32.mrb[0].mxu0
          %v518 = vadd.f32 %v393, %v517
          %v519 = vpop.f32.mrb[0].mxu0
          %v520 = vpop.f32.mrb[0].mxu0
          %v521 = vadd.f32 %v393, %v520
          %v522 = vpop.f32.mrb[0].mxu0
          %523 = vmatprep.mubr.bf16.mxu0 0
          %524 = vmatmul.mubr.bf16.gmra.mrb[0].mxu0 %v362
          %v525 = vpop.f32.mrb[0].mxu0
          %v526 = vadd.f32 %v393, %v525
          %v527 = vpop.f32.mrb[0].mxu0
          %v528 = vpop.f32.mrb[0].mxu0
          %v529 = vadd.f32 %v393, %v528
          %v530 = vpop.f32.mrb[0].mxu0
          %531 = vmatprep.mubr.bf16.mxu0 0
          %532 = vmatmul.mubr.bf16.gmra.mrb[0].mxu0 %v363
          %v533 = vpop.f32.mrb[0].mxu0
          %v534 = vadd.f32 %v393, %v533
          %v535 = vpop.f32.mrb[0].mxu0
          %v536 = vpop.f32.mrb[0].mxu0
          %v537 = vadd.f32 %v393, %v536
          %v538 = vpop.f32.mrb[0].mxu0
          %539 = vmatprep.mubr.bf16.mxu0 0
          %540 = vmatmul.mubr.bf16.gmra.mrb[0].mxu0 %v364
          %v541 = vpop.f32.mrb[0].mxu0
          %v542 = vadd.f32 %v393, %v541
          %v543 = vpop.f32.mrb[0].mxu0
          %v544 = vpop.f32.mrb[0].mxu0
          %v545 = vadd.f32 %v393, %v544
          %v546 = vpop.f32.mrb[0].mxu0
          %547 = vmatprep.mubr.bf16.mxu0 0
          %548 = vmatmul.mubr.bf16.gmra.mrb[0].mxu0 %v365
          %v549 = vpop.f32.mrb[0].mxu0
          %v550 = vadd.f32 %v393, %v549
          %v551 = vpop.f32.mrb[0].mxu0
          %v552 = vpop.f32.mrb[0].mxu0
          %v553 = vadd.f32 %v393, %v552
          %v554 = vpop.f32.mrb[0].mxu0
          %555 = vmatprep.mubr.bf16.mxu0 0
          %556 = vmatmul.mubr.bf16.gmra.mrb[0].mxu0 %v366
          %v557 = vpop.f32.mrb[0].mxu0
          %v558 = vadd.f32 %v393, %v557
          %v559 = vpop.f32.mrb[0].mxu0
          %v560 = vpop.f32.mrb[0].mxu0
          %v561 = vadd.f32 %v393, %v560
          %v562 = vpop.f32.mrb[0].mxu0
          %563 = vmatprep.mubr.bf16.mxu0 0
          %564 = vmatmul.mubr.bf16.gmra.mrb[0].mxu0 %v367
          %v565 = vpop.f32.mrb[0].mxu0
          %v566 = vadd.f32 %v393, %v565
          %v567 = vpop.f32.mrb[0].mxu0
          %v568 = vpop.f32.mrb[0].mxu0
          %v569 = vadd.f32 %v393, %v568
          %v570 = vpop.f32.mrb[0].mxu0
          %571 = vmatprep.mubr.bf16.mxu0 0
          %572 = vmatmul.mubr.bf16.gmra.mrb[0].mxu0 %v368
          %v573 = vpop.f32.mrb[0].mxu0
          %v574 = vadd.f32 %v393, %v573
          %v575 = vpop.f32.mrb[0].mxu0
          %v576 = vpop.f32.mrb[0].mxu0
          %v577 = vadd.f32 %v393, %v576
          %v578 = vpop.f32.mrb[0].mxu0
          %579 = vmatprep.mubr.bf16.mxu0 0
          %580 = vmatmul.mubr.bf16.gmra.mrb[0].mxu0 %v369
          %v581 = vpop.f32.mrb[0].mxu0
          %v582 = vadd.f32 %v393, %v581
          %v583 = vpop.f32.mrb[0].mxu0
          %v584 = vpop.f32.mrb[0].mxu0
          %v585 = vadd.f32 %v393, %v584
          %v586 = vpop.f32.mrb[0].mxu0
          %587 = vmatprep.mubr.bf16.mxu0 0
          %588 = vmatmul.mubr.bf16.gmra.mrb[0].mxu0 %v370
          %v589 = vpop.f32.mrb[0].mxu0
          %v590 = vadd.f32 %v393, %v589
          %v591 = vpop.f32.mrb[0].mxu0
          %v592 = vpop.f32.mrb[0].mxu0
          %v593 = vadd.f32 %v393, %v592
          %v594 = vpop.f32.mrb[0].mxu0
          %595 = vmatprep.mubr.bf16.mxu0 0
          %596 = vmatmul.mubr.bf16.gmra.mrb[0].mxu0 %v371
          %v597 = vpop.f32.mrb[0].mxu0
          %v598 = vadd.f32 %v393, %v597
          %v599 = vpop.f32.mrb[0].mxu0
          %v600 = vpop.f32.mrb[0].mxu0
          %v601 = vadd.f32 %v393, %v600
          %v602 = vpop.f32.mrb[0].mxu0
          %603 = vdwg.mxu0
          %604 = vxpose.xlu0.b32.start [1/16] %v478, 128
          %605 = vxpose.xlu0.b32.cont [2/16] %v481, 128
          %606 = vxpose.xlu0.b32.cont [3/16] %v486, 128
          %607 = vxpose.xlu0.b32.cont [4/16] %v489, 128
          %608 = vxpose.xlu0.b32.cont [5/16] %v494, 128
          %609 = vxpose.xlu0.b32.cont [6/16] %v497, 128
          %610 = vxpose.xlu0.b32.cont [7/16] %v502, 128
          %611 = vxpose.xlu0.b32.cont [8/16] %v505, 128
          %612 = vxpose.xlu0.b32.cont [9/16] %v510, 128
          %613 = vxpose.xlu0.b32.cont [10/16] %v513, 128
          %614 = vxpose.xlu0.b32.cont [11/16] %v518, 128
          %615 = vxpose.xlu0.b32.cont [12/16] %v521, 128
          %616 = vxpose.xlu0.b32.cont [13/16] %v526, 128
          %617 = vxpose.xlu0.b32.cont [14/16] %v529, 128
          %618 = vxpose.xlu0.b32.cont [15/16] %v534, 128
          %619 = vxpose.xlu0.b32.end [16/16] %v537, 128
          %v620 = vpop.trf.xlu0
          %v621 = vpop.trf.xlu0
          %v622 = vpop.trf.xlu0
          %v623 = vpop.trf.xlu0
          %v624 = vpop.trf.xlu0
          %v625 = vpop.trf.xlu0
          %v626 = vpop.trf.xlu0
          %v627 = vpop.trf.xlu0
          %v628 = vpop.trf.xlu0
          %v629 = vpop.trf.xlu0
          %v630 = vpop.trf.xlu0
          %v631 = vpop.trf.xlu0
          %v632 = vpop.trf.xlu0
          %v633 = vpop.trf.xlu0
          %v634 = vpop.trf.xlu0
          %v635 = vpop.trf.xlu0
          %636 = vxpose.xlu0.b32.start [1/16] %v542, 128
          %637 = vxpose.xlu0.b32.cont [2/16] %v545, 128
          %638 = vxpose.xlu0.b32.cont [3/16] %v550, 128
          %639 = vxpose.xlu0.b32.cont [4/16] %v553, 128
          %640 = vxpose.xlu0.b32.cont [5/16] %v558, 128
          %641 = vxpose.xlu0.b32.cont [6/16] %v561, 128
          %642 = vxpose.xlu0.b32.cont [7/16] %v566, 128
          %643 = vxpose.xlu0.b32.cont [8/16] %v569, 128
          %644 = vxpose.xlu0.b32.cont [9/16] %v574, 128
          %645 = vxpose.xlu0.b32.cont [10/16] %v577, 128
          %646 = vxpose.xlu0.b32.cont [11/16] %v582, 128
          %647 = vxpose.xlu0.b32.cont [12/16] %v585, 128
          %648 = vxpose.xlu0.b32.cont [13/16] %v590, 128
          %649 = vxpose.xlu0.b32.cont [14/16] %v593, 128
          %650 = vxpose.xlu0.b32.cont [15/16] %v598, 128
          %651 = vxpose.xlu0.b32.end [16/16] %v601, 128
          %v652 = vpop.trf.xlu0
          %v653 = vpop.trf.xlu0
          %v654 = vpop.trf.xlu0
          %v655 = vpop.trf.xlu0
          %v656 = vpop.trf.xlu0
          %v657 = vpop.trf.xlu0
          %v658 = vpop.trf.xlu0
          %v659 = vpop.trf.xlu0
          %v660 = vpop.trf.xlu0
          %v661 = vpop.trf.xlu0
          %v662 = vpop.trf.xlu0
          %v663 = vpop.trf.xlu0
          %v664 = vpop.trf.xlu0
          %v665 = vpop.trf.xlu0
          %v666 = vpop.trf.xlu0
          %v667 = vpop.trf.xlu0
          %v668 = vpack.c.bf16 %v621, %v620
          %v669 = vpack.c.bf16 %v653, %v652
          %v670 = vpack.c.bf16 %v623, %v622
          %v671 = vpack.c.bf16 %v655, %v654
          %v672 = vpack.c.bf16 %v625, %v624
          %v673 = vpack.c.bf16 %v657, %v656
          %v674 = vpack.c.bf16 %v627, %v626
          %v675 = vpack.c.bf16 %v659, %v658
          %v676 = vpack.c.bf16 %v629, %v628
          %v677 = vpack.c.bf16 %v661, %v660
          %v678 = vpack.c.bf16 %v631, %v630
          %v679 = vpack.c.bf16 %v663, %v662
          %v680 = vpack.c.bf16 %v633, %v632
          %v681 = vpack.c.bf16 %v665, %v664
          %v682 = vpack.c.bf16 %v635, %v634
          %v683 = vpack.c.bf16 %v667, %v666
          %v700 = vunpack.c.l.b16 %v668
          %v701 = vunpack.c.l.b16 %v669
          %v702 = vunpack.c.h.b16 %v668
          %v703 = vunpack.c.h.b16 %v669
          %v704 = vunpack.c.l.b16 %v670
          %v705 = vunpack.c.l.b16 %v671
          %v706 = vunpack.c.h.b16 %v670
          %v707 = vunpack.c.h.b16 %v671
          %v708 = vunpack.c.l.b16 %v672
          %v709 = vunpack.c.l.b16 %v673
          %v710 = vunpack.c.h.b16 %v672
          %v711 = vunpack.c.h.b16 %v673
          %v712 = vunpack.c.l.b16 %v674
          %v713 = vunpack.c.l.b16 %v675
          %v714 = vunpack.c.h.b16 %v674
          %v715 = vunpack.c.h.b16 %v675
          %v716 = vunpack.c.l.b16 %v676
          %v717 = vunpack.c.l.b16 %v677
          %v718 = vunpack.c.h.b16 %v676
          %v719 = vunpack.c.h.b16 %v677
          %v720 = vunpack.c.l.b16 %v678
          %v721 = vunpack.c.l.b16 %v679
          %v722 = vunpack.c.h.b16 %v678
          %v723 = vunpack.c.h.b16 %v679
          %v724 = vunpack.c.l.b16 %v680
          %v725 = vunpack.c.l.b16 %v681
          %v726 = vunpack.c.h.b16 %v680
          %v727 = vunpack.c.h.b16 %v681
          %v728 = vunpack.c.l.b16 %v682
          %v729 = vunpack.c.l.b16 %v683
          %v730 = vunpack.c.h.b16 %v682
          %v731 = vunpack.c.h.b16 %v683
          %v732 = vpack.c.b16 %v701, %v700
          %v733 = vpack.c.b16 %v703, %v702
          %v734 = vpack.c.b16 %v705, %v704
          %v735 = vpack.c.b16 %v707, %v706
          %v736 = vpack.c.b16 %v709, %v708
          %v737 = vpack.c.b16 %v711, %v710
          %v738 = vpack.c.b16 %v713, %v712
          %v739 = vpack.c.b16 %v715, %v714
          %v740 = vpack.c.b16 %v717, %v716
          %v741 = vpack.c.b16 %v719, %v718
          %v742 = vpack.c.b16 %v721, %v720
          %v743 = vpack.c.b16 %v723, %v722
          %v744 = vpack.c.b16 %v725, %v724
          %v745 = vpack.c.b16 %v727, %v726
          %v746 = vpack.c.b16 %v729, %v728
          %v747 = vpack.c.b16 %v731, %v730
          %764 = vst [vmem:[%s307] sm:$0xff] %v732
          %765 = vst [vmem:[%s307 + $0x8] sm:$0xff] %v733
          %766 = vst [vmem:[%s307 + $0x10] sm:$0xff] %v734
          %767 = vst [vmem:[%s307 + $0x18] sm:$0xff] %v735
          %768 = vst [vmem:[%s307 + $0x20] sm:$0xff] %v736
          %769 = vst [vmem:[%s307 + $0x28] sm:$0xff] %v737
          %770 = vst [vmem:[%s307 + $0x30] sm:$0xff] %v738
          %771 = vst [vmem:[%s307 + $0x38] sm:$0xff] %v739
          %772 = vst [vmem:[%s307 + $0x40] sm:$0xff] %v740
          %773 = vst [vmem:[%s307 + $0x48] sm:$0xff] %v741
          %774 = vst [vmem:[%s307 + $0x50] sm:$0xff] %v742
          %775 = vst [vmem:[%s307 + $0x58] sm:$0xff] %v743
          %776 = vst [vmem:[%s307 + $0x60] sm:$0xff] %v744
          %777 = vst [vmem:[%s307 + $0x68] sm:$0xff] %v745
          %778 = vst [vmem:[%s307 + $0x70] sm:$0xff] %v746
          %779 = vst [vmem:[%s307 + $0x78] sm:$0xff] %v747
          %v780 = vld [vmem:[#allocation9] sm:$0xf]
          %v781 = vld [vmem:[#allocation9 + $0x4] sm:$0xf]
          %v782 = vld [vmem:[#allocation9 + $0x8] sm:$0xf]
          %v783 = vld [vmem:[#allocation9 + $0xc] sm:$0xf]
          %v784 = vld [vmem:[#allocation9 + $0x10] sm:$0xf]
          %v785 = vld [vmem:[#allocation9 + $0x14] sm:$0xf]
          %v786 = vld [vmem:[#allocation9 + $0x18] sm:$0xf]
          %v787 = vld [vmem:[#allocation9 + $0x1c] sm:$0xf]
          %v788 = vld [vmem:[#allocation9 + $0x20] sm:$0xf]
          %v789 = vld [vmem:[#allocation9 + $0x24] sm:$0xf]
          %v790 = vld [vmem:[#allocation9 + $0x28] sm:$0xf]
          %v791 = vld [vmem:[#allocation9 + $0x2c] sm:$0xf]
          %v792 = vld [vmem:[#allocation9 + $0x30] sm:$0xf]
          %v793 = vld [vmem:[#allocation9 + $0x34] sm:$0xf]
          %v794 = vld [vmem:[#allocation9 + $0x38] sm:$0xf]
          %v795 = vld [vmem:[#allocation9 + $0x3c] sm:$0xf]
          %v796 = vld [vmem:[%s5] sm:$0x1]
          %v798 = vlaneseq
          %v799 = vshrl.u32 %v798, 7
          %v800 = vsub.s32 0, %v799
          %v801 = vrot.slane %v796, %v800
          %v819 = vunpack.c.l.b16 %v780
          %v820 = vunpack.c.l.b16 %v781
          %v821 = vunpack.c.l.b16 %v782
          %v822 = vunpack.c.l.b16 %v783
          %v823 = vunpack.c.l.b16 %v784
          %v824 = vunpack.c.l.b16 %v785
          %v825 = vunpack.c.l.b16 %v786
          %v826 = vunpack.c.l.b16 %v787
          %v827 = vunpack.c.l.b16 %v788
          %v828 = vunpack.c.l.b16 %v789
          %v829 = vunpack.c.l.b16 %v790
          %v830 = vunpack.c.l.b16 %v791
          %v831 = vunpack.c.l.b16 %v792
          %v832 = vunpack.c.l.b16 %v793
          %v833 = vunpack.c.l.b16 %v794
          %v834 = vunpack.c.l.b16 %v795
          %v835 = vpack.c.b16 %v820, %v819
          %v836 = vpack.c.b16 %v822, %v821
          %v837 = vpack.c.b16 %v824, %v823
          %v838 = vpack.c.b16 %v826, %v825
          %v839 = vpack.c.b16 %v828, %v827
          %v840 = vpack.c.b16 %v830, %v829
          %v841 = vpack.c.b16 %v832, %v831
          %v842 = vpack.c.b16 %v834, %v833
          %851 = vmatprep.subr.bf16.mxu0 0
          %852 = vmatpush1.bf16.msra.mxu0 %v835
          %853 = vmatprep.subr.bf16.mxu0 0
          %854 = vmatpush1.bf16.msra.mxu0 %v836
          %855 = vmatprep.subr.bf16.mxu0 0
          %856 = vmatpush1.bf16.msra.mxu0 %v837
          %857 = vmatprep.subr.bf16.mxu0 0
          %858 = vmatpush1.bf16.msra.mxu0 %v838
          %859 = vmatprep.subr.bf16.mxu0 0
          %860 = vmatpush1.bf16.msra.mxu0 %v839
          %861 = vmatprep.subr.bf16.mxu0 0
          %862 = vmatpush1.bf16.msra.mxu0 %v840
          %863 = vmatprep.subr.bf16.mxu0 0
          %864 = vmatpush1.bf16.msra.mxu0 %v841
          %865 = vmatprep.subr.bf16.mxu0 0
          %866 = vmatpush1.bf16.msra.mxu0 %v842
          %867 = vmatprep.subr.bf16.mxu0 0
          %868 = vmatpush1.bf16.msra.mxu0 0
          %869 = vmatprep.subr.bf16.mxu0 0
          %870 = vmatpush1.bf16.msra.mxu0 0
          %871 = vmatprep.subr.bf16.mxu0 0
          %872 = vmatpush1.bf16.msra.mxu0 0
          %873 = vmatprep.subr.bf16.mxu0 0
          %874 = vmatpush1.bf16.msra.mxu0 0
          %875 = vmatprep.subr.bf16.mxu0 0
          %876 = vmatpush1.bf16.msra.mxu0 0
          %877 = vmatprep.subr.bf16.mxu0 0
          %878 = vmatpush1.bf16.msra.mxu0 0
          %879 = vmatprep.subr.bf16.mxu0 0
          %880 = vmatpush1.bf16.msra.mxu0 0
          %881 = vmatprep.subr.bf16.mxu0 0
          %882 = vmatpush1.bf16.msra.mxu0 0
          %883 = vmatprep.mubr.bf16.mxu0 0
          %884 = vmatmul.mubr.bf16.gmra.mrb[0].mxu0 %v356
          %v885 = vpop.f32.mrb[0].mxu0
          %v886 = vadd.f32 %v801, %v885
          %v887 = vpop.f32.mrb[0].mxu0
          %v888 = vpop.f32.mrb[0].mxu0
          %v889 = vadd.f32 %v801, %v888
          %v890 = vpop.f32.mrb[0].mxu0
          %891 = vmatprep.mubr.bf16.mxu0 0
          %892 = vmatmul.mubr.bf16.gmra.mrb[0].mxu0 %v357
          %v893 = vpop.f32.mrb[0].mxu0
          %v894 = vadd.f32 %v801, %v893
          %v895 = vpop.f32.mrb[0].mxu0
          %v896 = vpop.f32.mrb[0].mxu0
          %v897 = vadd.f32 %v801, %v896
          %v898 = vpop.f32.mrb[0].mxu0
          %899 = vmatprep.mubr.bf16.mxu0 0
          %900 = vmatmul.mubr.bf16.gmra.mrb[0].mxu0 %v358
          %v901 = vpop.f32.mrb[0].mxu0
          %v902 = vadd.f32 %v801, %v901
          %v903 = vpop.f32.mrb[0].mxu0
          %v904 = vpop.f32.mrb[0].mxu0
          %v905 = vadd.f32 %v801, %v904
          %v906 = vpop.f32.mrb[0].mxu0
          %907 = vmatprep.mubr.bf16.mxu0 0
          %908 = vmatmul.mubr.bf16.gmra.mrb[0].mxu0 %v359
          %v909 = vpop.f32.mrb[0].mxu0
          %v910 = vadd.f32 %v801, %v909
          %v911 = vpop.f32.mrb[0].mxu0
          %v912 = vpop.f32.mrb[0].mxu0
          %v913 = vadd.f32 %v801, %v912
          %v914 = vpop.f32.mrb[0].mxu0
          %915 = vmatprep.mubr.bf16.mxu0 0
          %916 = vmatmul.mubr.bf16.gmra.mrb[0].mxu0 %v360
          %v917 = vpop.f32.mrb[0].mxu0
          %v918 = vadd.f32 %v801, %v917
          %v919 = vpop.f32.mrb[0].mxu0
          %v920 = vpop.f32.mrb[0].mxu0
          %v921 = vadd.f32 %v801, %v920
          %v922 = vpop.f32.mrb[0].mxu0
          %923 = vmatprep.mubr.bf16.mxu0 0
          %924 = vmatmul.mubr.bf16.gmra.mrb[0].mxu0 %v361
          %v925 = vpop.f32.mrb[0].mxu0
          %v926 = vadd.f32 %v801, %v925
          %v927 = vpop.f32.mrb[0].mxu0
          %v928 = vpop.f32.mrb[0].mxu0
          %v929 = vadd.f32 %v801, %v928
          %v930 = vpop.f32.mrb[0].mxu0
          %931 = vmatprep.mubr.bf16.mxu0 0
          %932 = vmatmul.mubr.bf16.gmra.mrb[0].mxu0 %v362
          %v933 = vpop.f32.mrb[0].mxu0
          %v934 = vadd.f32 %v801, %v933
          %v935 = vpop.f32.mrb[0].mxu0
          %v936 = vpop.f32.mrb[0].mxu0
          %v937 = vadd.f32 %v801, %v936
          %v938 = vpop.f32.mrb[0].mxu0
          %939 = vmatprep.mubr.bf16.mxu0 0
          %940 = vmatmul.mubr.bf16.gmra.mrb[0].mxu0 %v363
          %v941 = vpop.f32.mrb[0].mxu0
          %v942 = vadd.f32 %v801, %v941
          %v943 = vpop.f32.mrb[0].mxu0
          %v944 = vpop.f32.mrb[0].mxu0
          %v945 = vadd.f32 %v801, %v944
          %v946 = vpop.f32.mrb[0].mxu0
          %947 = vmatprep.mubr.bf16.mxu0 0
          %948 = vmatmul.mubr.bf16.gmra.mrb[0].mxu0 %v364
          %v949 = vpop.f32.mrb[0].mxu0
          %v950 = vadd.f32 %v801, %v949
          %v951 = vpop.f32.mrb[0].mxu0
          %v952 = vpop.f32.mrb[0].mxu0
          %v953 = vadd.f32 %v801, %v952
          %v954 = vpop.f32.mrb[0].mxu0
          %955 = vmatprep.mubr.bf16.mxu0 0
          %956 = vmatmul.mubr.bf16.gmra.mrb[0].mxu0 %v365
          %v957 = vpop.f32.mrb[0].mxu0
          %v958 = vadd.f32 %v801, %v957
          %v959 = vpop.f32.mrb[0].mxu0
          %v960 = vpop.f32.mrb[0].mxu0
          %v961 = vadd.f32 %v801, %v960
          %v962 = vpop.f32.mrb[0].mxu0
          %963 = vmatprep.mubr.bf16.mxu0 0
          %964 = vmatmul.mubr.bf16.gmra.mrb[0].mxu0 %v366
          %v965 = vpop.f32.mrb[0].mxu0
          %v966 = vadd.f32 %v801, %v965
          %v967 = vpop.f32.mrb[0].mxu0
          %v968 = vpop.f32.mrb[0].mxu0
          %v969 = vadd.f32 %v801, %v968
          %v970 = vpop.f32.mrb[0].mxu0
          %971 = vmatprep.mubr.bf16.mxu0 0
          %972 = vmatmul.mubr.bf16.gmra.mrb[0].mxu0 %v367
          %v973 = vpop.f32.mrb[0].mxu0
          %v974 = vadd.f32 %v801, %v973
          %v975 = vpop.f32.mrb[0].mxu0
          %v976 = vpop.f32.mrb[0].mxu0
          %v977 = vadd.f32 %v801, %v976
          %v978 = vpop.f32.mrb[0].mxu0
          %979 = vmatprep.mubr.bf16.mxu0 0
          %980 = vmatmul.mubr.bf16.gmra.mrb[0].mxu0 %v368
          %v981 = vpop.f32.mrb[0].mxu0
          %v982 = vadd.f32 %v801, %v981
          %v983 = vpop.f32.mrb[0].mxu0
          %v984 = vpop.f32.mrb[0].mxu0
          %v985 = vadd.f32 %v801, %v984
          %v986 = vpop.f32.mrb[0].mxu0
          %987 = vmatprep.mubr.bf16.mxu0 0
          %988 = vmatmul.mubr.bf16.gmra.mrb[0].mxu0 %v369
          %v989 = vpop.f32.mrb[0].mxu0
          %v990 = vadd.f32 %v801, %v989
          %v991 = vpop.f32.mrb[0].mxu0
          %v992 = vpop.f32.mrb[0].mxu0
          %v993 = vadd.f32 %v801, %v992
          %v994 = vpop.f32.mrb[0].mxu0
          %995 = vmatprep.mubr.bf16.mxu0 0
          %996 = vmatmul.mubr.bf16.gmra.mrb[0].mxu0 %v370
          %v997 = vpop.f32.mrb[0].mxu0
          %v998 = vadd.f32 %v801, %v997
          %v999 = vpop.f32.mrb[0].mxu0
          %v1000 = vpop.f32.mrb[0].mxu0
          %v1001 = vadd.f32 %v801, %v1000
          %v1002 = vpop.f32.mrb[0].mxu0
          %1003 = vmatprep.mubr.bf16.mxu0 0
          %1004 = vmatmul.mubr.bf16.gmra.mrb[0].mxu0 %v371
          %v1005 = vpop.f32.mrb[0].mxu0
          %v1006 = vadd.f32 %v801, %v1005
          %v1007 = vpop.f32.mrb[0].mxu0
          %v1008 = vpop.f32.mrb[0].mxu0
          %v1009 = vadd.f32 %v801, %v1008
          %v1010 = vpop.f32.mrb[0].mxu0
          %1011 = vdwg.mxu0
          %v1012 = vpack.c.bf16 %v889, %v886
          %v1013 = vpack.c.bf16 %v897, %v894
          %v1014 = vpack.c.bf16 %v905, %v902
          %v1015 = vpack.c.bf16 %v913, %v910
          %v1016 = vpack.c.bf16 %v921, %v918
          %v1017 = vpack.c.bf16 %v929, %v926
          %v1018 = vpack.c.bf16 %v937, %v934
          %v1019 = vpack.c.bf16 %v945, %v942
          %v1020 = vpack.c.bf16 %v953, %v950
          %v1021 = vpack.c.bf16 %v961, %v958
          %v1022 = vpack.c.bf16 %v969, %v966
          %v1023 = vpack.c.bf16 %v977, %v974
          %v1024 = vpack.c.bf16 %v985, %v982
          %v1025 = vpack.c.bf16 %v993, %v990
          %v1026 = vpack.c.bf16 %v1001, %v998
          %v1027 = vpack.c.bf16 %v1009, %v1006
          %v1044 = vunpack.c.l.b16 %v1012
          %v1045 = vunpack.c.h.b16 %v1012
          %v1046 = vunpack.c.l.b16 %v1013
          %v1047 = vunpack.c.h.b16 %v1013
          %v1048 = vunpack.c.l.b16 %v1014
          %v1049 = vunpack.c.h.b16 %v1014
          %v1050 = vunpack.c.l.b16 %v1015
          %v1051 = vunpack.c.h.b16 %v1015
          %v1052 = vunpack.c.l.b16 %v1016
          %v1053 = vunpack.c.h.b16 %v1016
          %v1054 = vunpack.c.l.b16 %v1017
          %v1055 = vunpack.c.h.b16 %v1017
          %v1056 = vunpack.c.l.b16 %v1018
          %v1057 = vunpack.c.h.b16 %v1018
          %v1058 = vunpack.c.l.b16 %v1019
          %v1059 = vunpack.c.h.b16 %v1019
          %v1060 = vunpack.c.l.b16 %v1020
          %v1061 = vunpack.c.h.b16 %v1020
          %v1062 = vunpack.c.l.b16 %v1021
          %v1063 = vunpack.c.h.b16 %v1021
          %v1064 = vunpack.c.l.b16 %v1022
          %v1065 = vunpack.c.h.b16 %v1022
          %v1066 = vunpack.c.l.b16 %v1023
          %v1067 = vunpack.c.h.b16 %v1023
          %v1068 = vunpack.c.l.b16 %v1024
          %v1069 = vunpack.c.h.b16 %v1024
          %v1070 = vunpack.c.l.b16 %v1025
          %v1071 = vunpack.c.h.b16 %v1025
          %v1072 = vunpack.c.l.b16 %v1026
          %v1073 = vunpack.c.h.b16 %v1026
          %v1074 = vunpack.c.l.b16 %v1027
          %v1075 = vunpack.c.h.b16 %v1027
          %v1076 = vpack.c.b16 %v1044, %v1044
          %v1077 = vpack.c.b16 %v1045, %v1045
          %v1078 = vpack.c.b16 %v1046, %v1046
          %v1079 = vpack.c.b16 %v1047, %v1047
          %v1080 = vpack.c.b16 %v1048, %v1048
          %v1081 = vpack.c.b16 %v1049, %v1049
          %v1082 = vpack.c.b16 %v1050, %v1050
          %v1083 = vpack.c.b16 %v1051, %v1051
          %v1084 = vpack.c.b16 %v1052, %v1052
          %v1085 = vpack.c.b16 %v1053, %v1053
          %v1086 = vpack.c.b16 %v1054, %v1054
          %v1087 = vpack.c.b16 %v1055, %v1055
          %v1088 = vpack.c.b16 %v1056, %v1056
          %v1089 = vpack.c.b16 %v1057, %v1057
          %v1090 = vpack.c.b16 %v1058, %v1058
          %v1091 = vpack.c.b16 %v1059, %v1059
          %v1092 = vpack.c.b16 %v1060, %v1060
          %v1093 = vpack.c.b16 %v1061, %v1061
          %v1094 = vpack.c.b16 %v1062, %v1062
          %v1095 = vpack.c.b16 %v1063, %v1063
          %v1096 = vpack.c.b16 %v1064, %v1064
          %v1097 = vpack.c.b16 %v1065, %v1065
          %v1098 = vpack.c.b16 %v1066, %v1066
          %v1099 = vpack.c.b16 %v1067, %v1067
          %v1100 = vpack.c.b16 %v1068, %v1068
          %v1101 = vpack.c.b16 %v1069, %v1069
          %v1102 = vpack.c.b16 %v1070, %v1070
          %v1103 = vpack.c.b16 %v1071, %v1071
          %v1104 = vpack.c.b16 %v1072, %v1072
          %v1105 = vpack.c.b16 %v1073, %v1073
          %v1106 = vpack.c.b16 %v1074, %v1074
          %v1107 = vpack.c.b16 %v1075, %v1075
          %1140 = vst [vmem:[%s314] sm:$0xf] %v1076
          %1141 = vst [vmem:[%s314 + $0x4] sm:$0xf] %v1077
          %1142 = vst [vmem:[%s314 + $0x8] sm:$0xf] %v1078
          %1143 = vst [vmem:[%s314 + $0xc] sm:$0xf] %v1079
          %1144 = vst [vmem:[%s314 + $0x10] sm:$0xf] %v1080
          %1145 = vst [vmem:[%s314 + $0x14] sm:$0xf] %v1081
          %1146 = vst [vmem:[%s314 + $0x18] sm:$0xf] %v1082
          %1147 = vst [vmem:[%s314 + $0x1c] sm:$0xf] %v1083
          %1148 = vst [vmem:[%s314 + $0x20] sm:$0xf] %v1084
          %1149 = vst [vmem:[%s314 + $0x24] sm:$0xf] %v1085
          %1150 = vst [vmem:[%s314 + $0x28] sm:$0xf] %v1086
          %1151 = vst [vmem:[%s314 + $0x2c] sm:$0xf] %v1087
          %1152 = vst [vmem:[%s314 + $0x30] sm:$0xf] %v1088
          %1153 = vst [vmem:[%s314 + $0x34] sm:$0xf] %v1089
          %1154 = vst [vmem:[%s314 + $0x38] sm:$0xf] %v1090
          %1155 = vst [vmem:[%s314 + $0x3c] sm:$0xf] %v1091
          %1156 = vst [vmem:[%s314 + $0x40] sm:$0xf] %v1092
          %1157 = vst [vmem:[%s314 + $0x44] sm:$0xf] %v1093
          %1158 = vst [vmem:[%s314 + $0x48] sm:$0xf] %v1094
          %1159 = vst [vmem:[%s314 + $0x4c] sm:$0xf] %v1095
          %1160 = vst [vmem:[%s314 + $0x50] sm:$0xf] %v1096
          %1161 = vst [vmem:[%s314 + $0x54] sm:$0xf] %v1097
          %1162 = vst [vmem:[%s314 + $0x58] sm:$0xf] %v1098
          %1163 = vst [vmem:[%s314 + $0x5c] sm:$0xf] %v1099
          %1164 = vst [vmem:[%s314 + $0x60] sm:$0xf] %v1100
          %1165 = vst [vmem:[%s314 + $0x64] sm:$0xf] %v1101
          %1166 = vst [vmem:[%s314 + $0x68] sm:$0xf] %v1102
          %1167 = vst [vmem:[%s314 + $0x6c] sm:$0xf] %v1103
          %1168 = vst [vmem:[%s314 + $0x70] sm:$0xf] %v1104
          %1169 = vst [vmem:[%s314 + $0x74] sm:$0xf] %v1105
          %1170 = vst [vmem:[%s314 + $0x78] sm:$0xf] %v1106
          %1171 = vst [vmem:[%s314 + $0x7c] sm:$0xf] %v1107
        $region56: #{tpu_custom_call.1} parent=39 // pred_fallthru
          _
        %s1172 = sand.u32 %s151, 1
        %s1173 = scalar_lea.sflag [#allocation6], %s1172
        %s1174 = sand.u32 %s151, 1
        %s1175 = smul.addr %s1174, 128
        %s1176 = scalar_lea.vmem [#allocation10], %s1175
        %s1177 = sand.u32 %s177, 1
        %s1178 = scalar_lea.sflag [#allocation12], %s1177
        %s1179 = sand.u32 %s177, 1
        %s1180 = smul.addr %s1179, 128
        %s1181 = scalar_lea.vmem [#allocation11], %s1180
        // Predicated region
        $region57: #{tpu_custom_call.1} parent=39 // pred_check
          %p1182 = pneg %p161
        $region58: #{tpu_custom_call.1} parent=39 // pred_check_branch
          %1184 = sbr.rel (%p1182) target = $region60
        $region59: #{tpu_custom_call.1} parent=39 // pred_region
          %s1185 = smul.u32 2, %s33
          %s1187 = ssub.s32 2048, 2048
          %1188 = vsyncadd %s1173, %s1187
          %s1189 = smul.addr %s1185, 64
          %s1190 = scalar_lea.hbm %s6, %s1189
          %s1191 = sshll.u32 %s1176, 4
          %s1192 = int_to_ptr.vmem [resolvable:$true] %s1191
          %1197 = dma.vmem_to_hbm [thread:$0]  %s1192, 2048, %s1190, %s1173, 128, 256, 8
        $region60: #{tpu_custom_call.1} parent=39 // pred_fallthru
          _
        // Predicated region
        $region61: #{tpu_custom_call.1} parent=39 // pred_check
          %p1198 = pneg %p187
        $region62: #{tpu_custom_call.1} parent=39 // pred_check_branch
          %1200 = sbr.rel (%p1198) target = $region64
        $region63: #{tpu_custom_call.1} parent=39 // pred_region
          %s1201 = smul.u32 32, %s33
          %s1203 = ssub.s32 2048, 2048
          %1204 = vsyncadd %s1178, %s1203
          %s1205 = smul.addr %s1201, 64
          %s1206 = scalar_lea.hbm %s7, %s1205
          %s1207 = sshll.u32 %s1181, 4
          %s1208 = int_to_ptr.vmem [resolvable:$true] %s1207
          %1213 = dma.vmem_to_hbm [thread:$0]  %s1208, 2048, %s1206, %s1178, 64, 64, 4
        $region64: #{tpu_custom_call.1} parent=39 // pred_fallthru
          _
      $region40: #{tpu_custom_call.1} parent=5 // pred_fallthru
        _
      %p1214 = scmp.le.s32.totalorder 2, %s28
      // Predicated region
      $region65: #{tpu_custom_call.1} parent=5 // pred_check
        %p1215 = pneg %p1214
      $region66: #{tpu_custom_call.1} parent=5 // pred_check_branch
        %1217 = sbr.rel (%p1215) target = $region68
      $region67: #{tpu_custom_call.1} parent=5 // pred_region
        %s1218 = ssub.s32 %s28, 2
        // Predicated region
        $region69: #{tpu_custom_call.1} parent=67 // pred_check
          %p1219 = pneg %p167
        $region70: #{tpu_custom_call.1} parent=67 // pred_check_branch
          %1221 = sbr.rel (%p1219) target = $region72
        $region71: #{tpu_custom_call.1} parent=67 // pred_region
          %s1222 = sand.u32 %s152, 1
          %s1223 = scalar_lea.sflag [#allocation6], %s1222
          %s1224 = sand.u32 %s152, 1
          %s1225 = smul.addr %s1224, 128
          %s1226 = scalar_lea.vmem [#allocation10], %s1225
          %1227 = dma.done %s1223, 2048
        $region72: #{tpu_custom_call.1} parent=67 // pred_fallthru
          _
        // Predicated region
        $region73: #{tpu_custom_call.1} parent=67 // pred_check
          %p1228 = pneg %p193
        $region74: #{tpu_custom_call.1} parent=67 // pred_check_branch
          %1230 = sbr.rel (%p1228) target = $region76
        $region75: #{tpu_custom_call.1} parent=67 // pred_region
          %s1231 = sand.u32 %s178, 1
          %s1232 = scalar_lea.sflag [#allocation12], %s1231
          %s1233 = sand.u32 %s178, 1
          %s1234 = smul.addr %s1233, 128
          %s1235 = scalar_lea.vmem [#allocation11], %s1234
          %1236 = dma.done %s1232, 2048
        $region76: #{tpu_custom_call.1} parent=67 // pred_fallthru
          _
      $region68: #{tpu_custom_call.1} parent=5 // pred_fallthru
        _
    $region6: #{tpu_custom_call.1} parent=1 // loop_footer
      %s32 = sadd.s32 1, %s28
    $region7: #{tpu_custom_call.1} parent=1 // loop_footer_branch
      %27 = sbr.rel target = $region3
    $region8: #{tpu_custom_call.1} parent=1 // loop_exit
      _
    %1237 = vsyncpa [#allocation5], 1
    %s1238 = scalar_lea.sflag [#allocation5], 1
    %1239 = vsyncpa %s1238, 1
    %1240 = vsyncpa [#allocation8], 1
    %1241 = vsyncpa [#allocation6], 1
    %s1242 = scalar_lea.sflag [#allocation6], 1
    %1243 = vsyncpa %s1242, 1
    %1244 = vsyncpa [#allocation12], 1
    %s1245 = scalar_lea.sflag [#allocation12], 1
    %1246 = vsyncpa %s1245, 1

</llo_original>
